<compile_context>
chip_gen: v7x
topology: tpu7x:2x2x1
jax: 0.10.0
libtpu: 0.0.40
codegen_flags: <defaults>
</compile_context>

<pallas_src>
import functools

import jax
import jax.numpy as jnp
from jax import lax
from jax.experimental import pallas as pl
from jax.experimental.pallas import tpu as pltpu

# The PyTorch module reads alpha/beta from a global config dict.
config = {"tversky_alpha_beta": (0.5, 0.5)}

_LANES = 128
_SUBLANES = 8
_MAX_BLOCK_ROWS = 8192      # DMA block: (8192, 128) f32 = 4 MiB per input buffer
_CHUNK_ROWS = 512           # compute chunk within a block (keeps temporaries small)
_NUM_SPLITS = 2             # leading "parallel" grid axis (dual-TC on v7x)
_VMEM_LIMIT_BYTES = 32 * 1024 * 1024


def _tversky_partial_kernel(x_ref, t_ref, tp_out, fp_out, fn_out,
                            tp_acc, fp_acc, fn_acc, *,
                            block_rows, chunk_rows, steps_per_split,
                            valid_rows, needs_mask):
    """Accumulates per-split partial sums of TP / FP / FN into (8,128) accumulators."""
    i = pl.program_id(1)

    @pl.when(i == 0)
    def _init():
        tp_acc[...] = jnp.zeros_like(tp_acc)
        fp_acc[...] = jnp.zeros_like(fp_acc)
        fn_acc[...] = jnp.zeros_like(fn_acc)

    # Logical (unclamped) block index of this grid step.
    blk = pl.program_id(0) * steps_per_split + i
    block_row0 = blk * block_rows

    def accumulate(row_off, nrows):
        x = x_ref[pl.ds(row_off, nrows), :].astype(jnp.float32)
        t = t_ref[pl.ds(row_off, nrows), :].astype(jnp.float32)
        if needs_mask:
            # Zero rows past the valid extent (block / split rounding tail).
            iota = lax.broadcasted_iota(jnp.int32, (nrows, _LANES), 0)
            keep = iota < (valid_rows - (block_row0 + row_off))
            x = jnp.where(keep, x, 0.0)
            t = jnp.where(keep, t, 0.0)
        xt = x * t

        def fold(v):  # (nrows,128) -> one vreg (8,128); pure VPU vreg adds
            return jnp.sum(v.reshape(nrows // _SUBLANES, _SUBLANES, _LANES), axis=0)

        tp_acc[...] += fold(xt)       # x * t
        fp_acc[...] += fold(x - xt)   # (1 - t) * x, accumulated directly
        fn_acc[...] += fold(t - xt)   # t * (1 - x), accumulated directly

    num_full = block_rows // chunk_rows
    rem_rows = block_rows - num_full * chunk_rows

    if num_full:
        @pl.loop(0, num_full)
        def _(j):
            accumulate(pl.multiple_of(j * chunk_rows, chunk_rows), chunk_rows)
    if rem_rows:
        accumulate(num_full * chunk_rows, rem_rows)

    @pl.when(i == pl.num_programs(1) - 1)
    def _finalize():
        tp_out[...] = tp_acc[...].reshape(1, _SUBLANES, _LANES)
        fp_out[...] = fp_acc[...].reshape(1, _SUBLANES, _LANES)
        fn_out[...] = fn_acc[...].reshape(1, _SUBLANES, _LANES)


def tversky_loss(inputs, targets, smooth=1e-6, alpha=None, beta=None, *,
                 max_block_rows=_MAX_BLOCK_ROWS, num_splits=_NUM_SPLITS):
    """Pallas TPU implementation of TverskyLoss.forward (returns scalar f32)."""
    # Read the (mutable) global config at call time, matching the PyTorch module.
    if alpha is None:
        alpha = config["tversky_alpha_beta"][0]
    if beta is None:
        beta = config["tversky_alpha_beta"][1]

    x = jnp.reshape(inputs, (-1,))
    t = jnp.reshape(targets, (-1,))
    n = x.shape[0]

    # Alignment padding only (<= 1023 neutral zeros).  Block / split granularity
    # is handled by in-kernel masking, never padding.
    # TODO(synk): a fully pad-free path for n % 1024 != 0 would need a 1-D ref
    # with element-offset masking; the pad copy only triggers for unaligned n.
    tile = _SUBLANES * _LANES
    padded = pl.cdiv(n, tile) * tile
    if padded != n:
        x = jnp.pad(x, (0, padded - n))
        t = jnp.pad(t, (0, padded - n))

    rows = padded // _LANES                                  # multiple of 8
    block_rows = rows if rows <= max_block_rows else max_block_rows
    chunk_rows = min(_CHUNK_ROWS, block_rows)
    total_blocks = pl.cdiv(rows, block_rows)
    num_splits = min(num_splits, total_blocks)
    steps_per_split = pl.cdiv(total_blocks, num_splits)
    needs_mask = (num_splits * steps_per_split * block_rows) != rows

    x2 = x.reshape(rows, _LANES)
    t2 = t.reshape(rows, _LANES)

    if num_splits * steps_per_split > total_blocks:
        # Trailing grid steps are entirely past the data: clamp their DMA source;
        # their contribution is zeroed by the in-kernel row mask.
        def in_map(c, i):
            return (jnp.minimum(c * steps_per_split + i, total_blocks - 1), 0)
    else:
        def in_map(c, i):
            return (c * steps_per_split + i, 0)

    kernel = functools.partial(
        _tversky_partial_kernel,
        block_rows=block_rows, chunk_rows=chunk_rows,
        steps_per_split=steps_per_split, valid_rows=rows,
        needs_mask=needs_mask)

    part_shape = jax.ShapeDtypeStruct((num_splits, _SUBLANES, _LANES), jnp.float32)
    part_spec = pl.BlockSpec((1, _SUBLANES, _LANES), lambda c, i: (c, 0, 0))

    tp_p, fp_p, fn_p = pl.pallas_call(
        kernel,
        out_shape=(part_shape, part_shape, part_shape),
        grid_spec=pltpu.PrefetchScalarGridSpec(
            num_scalar_prefetch=0,
            grid=(num_splits, steps_per_split),
            in_specs=[
                pl.BlockSpec((block_rows, _LANES), in_map),
                pl.BlockSpec((block_rows, _LANES), in_map),
            ],
            out_specs=(part_spec, part_spec, part_spec),
            scratch_shapes=[
                pltpu.VMEM((_SUBLANES, _LANES), jnp.float32),  # TP partial
                pltpu.VMEM((_SUBLANES, _LANES), jnp.float32),  # FP partial
                pltpu.VMEM((_SUBLANES, _LANES), jnp.float32),  # FN partial
            ],
        ),
        compiler_params=pltpu.CompilerParams(
            dimension_semantics=("parallel", "arbitrary"),
            vmem_limit_bytes=_VMEM_LIMIT_BYTES,
        ),
    )(x2, t2)

    # Tiny cross-split combine + scalar formula (a few XLA ops on (splits,8,128)).
    tp = jnp.sum(tp_p)
    fp = jnp.sum(fp_p)
    fn = jnp.sum(fn_p)
    tversky_index = (tp + smooth) / (tp + alpha * fn + beta * fp + smooth)
    return (1.0 - tversky_index).astype(jnp.float32)


def _reference(inputs, targets, smooth=1e-6, alpha=None, beta=None):
    if alpha is None:
        alpha = config["tversky_alpha_beta"][0]
    if beta is None:
        beta = config["tversky_alpha_beta"][1]
    x = jnp.reshape(inputs, (-1,)).astype(jnp.float32)
    t = jnp.reshape(targets, (-1,)).astype(jnp.float32)
    tp = jnp.sum(x * t)
    fp = jnp.sum((1.0 - t) * x)
    fn = jnp.sum(t * (1.0 - x))
    return 1.0 - (tp + smooth) / (tp + alpha * fn + beta * fp + smooth)


if __name__ == "__main__":
    key = jax.random.PRNGKey(0)
    k1, k2, k3, k4, k5, k6 = jax.random.split(key, 6)

    # Main case: NCHW probabilities + binary targets (matches the module usage).
    inputs = jax.random.uniform(k1, (2, 4, 16, 16), dtype=jnp.float32)
    targets = (jax.random.uniform(k2, (2, 4, 16, 16)) > 0.5).astype(jnp.float32)
    loss = tversky_loss(inputs, targets)
    jax.block_until_ready(loss)
    ref = _reference(inputs, targets)
    assert jnp.allclose(loss, ref, atol=1e-5, rtol=1e-5), (loss, ref)

    # Exercise the multi-block dual-split path (no masking needed).
    loss2 = tversky_loss(inputs, targets, max_block_rows=8)
    assert jnp.allclose(loss2, ref, atol=1e-5, rtol=1e-5), (loss2, ref)

    # Exercise the masked partial-last-block path.
    inputs3 = jax.random.uniform(k3, (2, 4, 20, 20), dtype=jnp.float32)
    targets3 = (jax.random.uniform(k4, (2, 4, 20, 20)) > 0.5).astype(jnp.float32)
    loss3 = tversky_loss(inputs3, targets3, max_block_rows=24)
    assert jnp.allclose(loss3, _reference(inputs3, targets3), atol=1e-5, rtol=1e-5)

    # Exercise the clamped fully-out-of-bounds tail-block path (uneven split).
    inputs4 = jax.random.uniform(k5, (2, 4, 25, 25), dtype=jnp.float32)
    targets4 = (jax.random.uniform(k6, (2, 4, 25, 25)) > 0.5).astype(jnp.float32)
    loss4 = tversky_loss(inputs4, targets4, max_block_rows=16)
    assert jnp.allclose(loss4, _reference(inputs4, targets4), atol=1e-5, rtol=1e-5)

    print("KERNEL_OK")
</pallas_src>

<mosaic_0001>
module attributes {stable_mosaic.version = 11 : i64} {
  func.func @_tversky_partial_kernel(%arg0: i32, %arg1: i32, %arg2: memref<16x128xf32, #tpu.memory_space<vmem>>, %arg3: memref<16x128xf32, #tpu.memory_space<vmem>>, %arg4: memref<1x8x128xf32, #tpu.memory_space<vmem>>, %arg5: memref<1x8x128xf32, #tpu.memory_space<vmem>>, %arg6: memref<1x8x128xf32, #tpu.memory_space<vmem>>, %arg7: memref<8x128xf32, #tpu.memory_space<vmem>>, %arg8: memref<8x128xf32, #tpu.memory_space<vmem>>, %arg9: memref<8x128xf32, #tpu.memory_space<vmem>>) attributes {dimension_semantics = [#tpu.dimension_semantics<parallel>, #tpu.dimension_semantics<arbitrary>], iteration_bounds = array<i64: 1, 1>, scalar_prefetch = 0 : i64, scratch_operands = 3 : i64, tpu.core_type = #tpu.core_type<tc>, window_params = [{transform_indices = @transform_0, window_bounds = array<i64: 16, 128>}, {transform_indices = @transform_1, window_bounds = array<i64: 16, 128>}, {transform_indices = @transform_2, window_bounds = array<i64: 1, 8, 128>}, {transform_indices = @transform_3, window_bounds = array<i64: 1, 8, 128>}, {transform_indices = @transform_4, window_bounds = array<i64: 1, 8, 128>}]} {
    %c0_i32 = arith.constant 0 : i32
    %0 = arith.cmpi eq, %arg1, %c0_i32 : i32
    %1 = arith.extui %0 : i1 to i32
    %c0_i32_0 = arith.constant 0 : i32
    %2 = arith.cmpi ne, %1, %c0_i32_0 : i32
    scf.if %2 {
      %cst_21 = arith.constant 0.000000e+00 : f32
      %32 = vector.broadcast %cst_21 : f32 to vector<8x128xf32>
      %c0_22 = arith.constant 0 : index
      %c0_23 = arith.constant 0 : index
      %33 = vector.load %arg7[%c0_22, %c0_23] : memref<8x128xf32, #tpu.memory_space<vmem>>, vector<8x128xf32>
      tpu.vector_store %arg7[%c0_22, %c0_23], %32 {strides = array<i32>} : memref<8x128xf32, #tpu.memory_space<vmem>>, vector<8x128xf32>,
      %cst_24 = arith.constant 0.000000e+00 : f32
      %34 = vector.broadcast %cst_24 : f32 to vector<8x128xf32>
      %c0_25 = arith.constant 0 : index
      %c0_26 = arith.constant 0 : index
      %35 = vector.load %arg8[%c0_25, %c0_26] : memref<8x128xf32, #tpu.memory_space<vmem>>, vector<8x128xf32>
      tpu.vector_store %arg8[%c0_25, %c0_26], %34 {strides = array<i32>} : memref<8x128xf32, #tpu.memory_space<vmem>>, vector<8x128xf32>,
      %cst_27 = arith.constant 0.000000e+00 : f32
      %36 = vector.broadcast %cst_27 : f32 to vector<8x128xf32>
      %c0_28 = arith.constant 0 : index
      %c0_29 = arith.constant 0 : index
      %37 = vector.load %arg9[%c0_28, %c0_29] : memref<8x128xf32, #tpu.memory_space<vmem>>, vector<8x128xf32>
      tpu.vector_store %arg9[%c0_28, %c0_29], %36 {strides = array<i32>} : memref<8x128xf32, #tpu.memory_space<vmem>>, vector<8x128xf32>,
    } else {
    }
    %c0_i32_1 = arith.constant 0 : i32
    %c1_i32 = arith.constant 1 : i32
    %3 = arith.muli %c0_i32_1, %c1_i32 : i32
    %c0_i32_2 = arith.constant 0 : i32
    %4 = arith.addi %c0_i32_2, %3 : i32
    %c16_i32 = arith.constant 16 : i32
    %5 = arith.muli %4, %c16_i32 : i32
    %6 = tpu.assume_multiple %5, 16 : i32
    %7 = arith.index_cast %6 : i32 to index
    %c0 = arith.constant 0 : index
    %8 = vector.load %arg2[%7, %c0] : memref<16x128xf32, #tpu.memory_space<vmem>>, vector<16x128xf32>
    %9 = arith.index_cast %6 : i32 to index
    %c0_3 = arith.constant 0 : index
    %10 = vector.load %arg3[%9, %c0_3] : memref<16x128xf32, #tpu.memory_space<vmem>>, vector<16x128xf32>
    %11 = arith.mulf %8, %10 : vector<16x128xf32>
    %c0_4 = arith.constant 0 : index
    %c0_5 = arith.constant 0 : index
    %12 = vector.load %arg7[%c0_4, %c0_5] : memref<8x128xf32, #tpu.memory_space<vmem>>, vector<8x128xf32>
    %13 = vector.shape_cast %11 : vector<16x128xf32> to vector<2x8x128xf32>
    %cst = arith.constant dense<0.000000e+00> : vector<8x128xf32>
    %14 = vector.multi_reduction <add>, %13, %cst [0] : vector<2x8x128xf32> to vector<8x128xf32>
    %15 = arith.addf %12, %14 : vector<8x128xf32>
    %c0_6 = arith.constant 0 : index
    %c0_7 = arith.constant 0 : index
    %16 = vector.load %arg7[%c0_6, %c0_7] : memref<8x128xf32, #tpu.memory_space<vmem>>, vector<8x128xf32>
    tpu.vector_store %arg7[%c0_6, %c0_7], %15 {strides = array<i32>} : memref<8x128xf32, #tpu.memory_space<vmem>>, vector<8x128xf32>,
    %c0_8 = arith.constant 0 : index
    %c0_9 = arith.constant 0 : index
    %17 = vector.load %arg8[%c0_8, %c0_9] : memref<8x128xf32, #tpu.memory_space<vmem>>, vector<8x128xf32>
    %18 = arith.subf %8, %11 : vector<16x128xf32>
    %19 = vector.shape_cast %18 : vector<16x128xf32> to vector<2x8x128xf32>
    %cst_10 = arith.constant dense<0.000000e+00> : vector<8x128xf32>
    %20 = vector.multi_reduction <add>, %19, %cst_10 [0] : vector<2x8x128xf32> to vector<8x128xf32>
    %21 = arith.addf %17, %20 : vector<8x128xf32>
    %c0_11 = arith.constant 0 : index
    %c0_12 = arith.constant 0 : index
    %22 = vector.load %arg8[%c0_11, %c0_12] : memref<8x128xf32, #tpu.memory_space<vmem>>, vector<8x128xf32>
    tpu.vector_store %arg8[%c0_11, %c0_12], %21 {strides = array<i32>} : memref<8x128xf32, #tpu.memory_space<vmem>>, vector<8x128xf32>,
    %c0_13 = arith.constant 0 : index
    %c0_14 = arith.constant 0 : index
    %23 = vector.load %arg9[%c0_13, %c0_14] : memref<8x128xf32, #tpu.memory_space<vmem>>, vector<8x128xf32>
    %24 = arith.subf %10, %11 : vector<16x128xf32>
    %25 = vector.shape_cast %24 : vector<16x128xf32> to vector<2x8x128xf32>
    %cst_15 = arith.constant dense<0.000000e+00> : vector<8x128xf32>
    %26 = vector.multi_reduction <add>, %25, %cst_15 [0] : vector<2x8x128xf32> to vector<8x128xf32>
    %27 = arith.addf %23, %26 : vector<8x128xf32>
    %c0_16 = arith.constant 0 : index
    %c0_17 = arith.constant 0 : index
    %28 = vector.load %arg9[%c0_16, %c0_17] : memref<8x128xf32, #tpu.memory_space<vmem>>, vector<8x128xf32>
    tpu.vector_store %arg9[%c0_16, %c0_17], %27 {strides = array<i32>} : memref<8x128xf32, #tpu.memory_space<vmem>>, vector<8x128xf32>,
    %c1_i32_18 = arith.constant 1 : i32
    %c0_i32_19 = arith.constant 0 : i32
    %29 = arith.cmpi eq, %arg1, %c0_i32_19 : i32
    %30 = arith.extui %29 : i1 to i32
    %c0_i32_20 = arith.constant 0 : i32
    %31 = arith.cmpi ne, %30, %c0_i32_20 : i32
    scf.if %31 {
      %c0_21 = arith.constant 0 : index
      %c0_22 = arith.constant 0 : index
      %32 = vector.load %arg7[%c0_21, %c0_22] : memref<8x128xf32, #tpu.memory_space<vmem>>, vector<8x128xf32>
      %33 = vector.shape_cast %32 : vector<8x128xf32> to vector<1x8x128xf32>
      %c0_23 = arith.constant 0 : index
      %c0_24 = arith.constant 0 : index
      %c0_25 = arith.constant 0 : index
      %34 = vector.load %arg4[%c0_23, %c0_24, %c0_25] : memref<1x8x128xf32, #tpu.memory_space<vmem>>, vector<1x8x128xf32>
      tpu.vector_store %arg4[%c0_23, %c0_24, %c0_25], %33 {strides = array<i32>} : memref<1x8x128xf32, #tpu.memory_space<vmem>>, vector<1x8x128xf32>,
      %c0_26 = arith.constant 0 : index
      %c0_27 = arith.constant 0 : index
      %35 = vector.load %arg8[%c0_26, %c0_27] : memref<8x128xf32, #tpu.memory_space<vmem>>, vector<8x128xf32>
      %36 = vector.shape_cast %35 : vector<8x128xf32> to vector<1x8x128xf32>
      %c0_28 = arith.constant 0 : index
      %c0_29 = arith.constant 0 : index
      %c0_30 = arith.constant 0 : index
      %37 = vector.load %arg5[%c0_28, %c0_29, %c0_30] : memref<1x8x128xf32, #tpu.memory_space<vmem>>, vector<1x8x128xf32>
      tpu.vector_store %arg5[%c0_28, %c0_29, %c0_30], %36 {strides = array<i32>} : memref<1x8x128xf32, #tpu.memory_space<vmem>>, vector<1x8x128xf32>,
      %c0_31 = arith.constant 0 : index
      %c0_32 = arith.constant 0 : index
      %38 = vector.load %arg9[%c0_31, %c0_32] : memref<8x128xf32, #tpu.memory_space<vmem>>, vector<8x128xf32>
      %39 = vector.shape_cast %38 : vector<8x128xf32> to vector<1x8x128xf32>
      %c0_33 = arith.constant 0 : index
      %c0_34 = arith.constant 0 : index
      %c0_35 = arith.constant 0 : index
      %40 = vector.load %arg6[%c0_33, %c0_34, %c0_35] : memref<1x8x128xf32, #tpu.memory_space<vmem>>, vector<1x8x128xf32>
      tpu.vector_store %arg6[%c0_33, %c0_34, %c0_35], %39 {strides = array<i32>} : memref<1x8x128xf32, #tpu.memory_space<vmem>>, vector<1x8x128xf32>,
    } else {
    }
    return
  }
  func.func @transform_0(%arg0: i32, %arg1: i32) -> (i32, i32) {
    %c1_i32 = arith.constant 1 : i32
    %0 = arith.muli %arg0, %c1_i32 : i32
    %1 = arith.addi %0, %arg1 : i32
    %c0_i32 = arith.constant 0 : i32
    %c0_i32_0 = arith.constant 0 : i32
    return %1, %c0_i32 : i32, i32
  }
  func.func @transform_1(%arg0: i32, %arg1: i32) -> (i32, i32) {
    %c1_i32 = arith.constant 1 : i32
    %0 = arith.muli %arg0, %c1_i32 : i32
    %1 = arith.addi %0, %arg1 : i32
    %c0_i32 = arith.constant 0 : i32
    %c0_i32_0 = arith.constant 0 : i32
    return %1, %c0_i32 : i32, i32
  }
  func.func @transform_2(%arg0: i32, %arg1: i32) -> (i32, i32, i32) {
    %c0_i32 = arith.constant 0 : i32
    %c0_i32_0 = arith.constant 0 : i32
    %c0_i32_1 = arith.constant 0 : i32
    return %arg0, %c0_i32, %c0_i32_0 : i32, i32, i32
  }
  func.func @transform_3(%arg0: i32, %arg1: i32) -> (i32, i32, i32) {
    %c0_i32 = arith.constant 0 : i32
    %c0_i32_0 = arith.constant 0 : i32
    %c0_i32_1 = arith.constant 0 : i32
    return %arg0, %c0_i32, %c0_i32_0 : i32, i32, i32
  }
  func.func @transform_4(%arg0: i32, %arg1: i32) -> (i32, i32, i32) {
    %c0_i32 = arith.constant 0 : i32
    %c0_i32_0 = arith.constant 0 : i32
    %c0_i32_1 = arith.constant 0 : i32
    return %arg0, %c0_i32, %c0_i32_0 : i32, i32, i32
  }
}

</mosaic_0001>

<llo_original>
// kernel: tpu_custom_call.1
$region0: #{tpu_custom_call.1}
  #allocation0 [shape = 'u32[]', space=smem, size = 0x4, offset = 0x4, fixed_abs, tag = 'smem constant byte address 0x4 - core index']
  #allocation1 [shape = 'u32[144,128]{1,0:T(1,128)}', space=vmem, size = 0x12000, scoped, tag = 'internal scratch']
  #allocation2 [shape = 'f32[8,128]{1,0:T(8,128)}', space=vmem, size = 0x1000, scoped, tag = 'scratch operand']
  #allocation3 [shape = 'f32[8,128]{1,0:T(8,128)}', space=vmem, size = 0x1000, scoped, tag = 'scratch operand']
  #allocation4 [shape = 'f32[8,128]{1,0:T(8,128)}', space=vmem, size = 0x1000, scoped, tag = 'scratch operand']
  %s0 = inlined_call_operand.hbm [shape: f32[16,128], index: 0, kind: input, shape index: {}]
  %s1 = inlined_call_operand.hbm [shape: f32[16,128], index: 1, kind: input, shape index: {}]
  %s2 = inlined_call_operand.hbm [shape: f32[1,8,128], index: 2, kind: output, shape index: {0}]
  %s3 = inlined_call_operand.hbm [shape: f32[1,8,128], index: 3, kind: output, shape index: {1}]
  %s4 = inlined_call_operand.hbm [shape: f32[1,8,128], index: 4, kind: output, shape index: {2}]
  %5 = xla_tuple %s2, %s3, %s4
  %s6 = sld [smem:[#allocation0]]
  $region50: #{tpu_custom_call.1} parent=0
    _
  %s8 = ssub.s32 1, %s6
  %s9 = scalar_select 0, %s8, %s6
  $region1: #{tpu_custom_call.1} parent=0
    #allocation5 [shape = 'u8[8192]{0}', space=vmem, size = 0x2000, scoped, tag = 'input window, operand 0, single buffered']
    #allocation6 [shape = 's32[1]{0}', space=sflag, size = 0x4, scoped, tag = 'scoped memory for tpu_custom_call.1']
    #allocation7 [shape = 's32[1]{0}', space=sflag, size = 0x4, scoped, tag = 'scoped memory for tpu_custom_call.1']
    #allocation8 [shape = 'u8[8192]{0}', space=vmem, size = 0x2000, scoped, tag = 'input window, operand 1, single buffered']
    #allocation9 [shape = 's32[1]{0}', space=sflag, size = 0x4, scoped, tag = 'scoped memory for tpu_custom_call.1']
    #allocation10 [shape = 'u8[4096]{0}', space=vmem, size = 0x1000, scoped, tag = 'output window, operand 0, single buffered']
    #allocation11 [shape = 'u8[4096]{0}', space=vmem, size = 0x1000, scoped, tag = 'output window, operand 1, single buffered']
    #allocation12 [shape = 's32[1]{0}', space=sflag, size = 0x4, scoped, tag = 'scoped memory for tpu_custom_call.1']
    #allocation13 [shape = 'u8[4096]{0}', space=vmem, size = 0x1000, scoped, tag = 'output window, operand 2, single buffered']
    %10 = vsyncpa [#allocation6], 0
    %11 = vsyncpa [#allocation9], 0
    %12 = vsyncpa [#allocation7], 0
    %13 = vsyncpa [#allocation12], 0
    // Predicated region
    $region2: #{tpu_custom_call.1} parent=1 // pred_check
      _
    $region3: #{tpu_custom_call.1} parent=1 // pred_check_branch
      %15 = sbr.rel (0) target = $region5
    $region4: #{tpu_custom_call.1} parent=1 // pred_region
      %s16 = sadd.s32 0, 0
      %s17 = smul.u32 2, %s16
      %s19 = ssub.s32 256, 256
      %20 = vsyncadd [#allocation6], %s19
      %s21 = smul.addr %s17, 128
      %s22 = scalar_lea.hbm %s0, %s21
      %s23 = sshll.u32 [#allocation5], 4
      %s24 = int_to_ptr.vmem [resolvable:$true] %s23
      %29 = dma.hbm_to_vmem [thread:$0]  %s22, 256, %s24, [#allocation6], 128, 128, 8
    $region5: #{tpu_custom_call.1} parent=1 // pred_fallthru
      _
    // Predicated region
    $region6: #{tpu_custom_call.1} parent=1 // pred_check
      _
    $region7: #{tpu_custom_call.1} parent=1 // pred_check_branch
      %31 = sbr.rel (0) target = $region9
    $region8: #{tpu_custom_call.1} parent=1 // pred_region
      %s32 = sadd.s32 0, 0
      %s33 = smul.u32 2, %s32
      %s35 = ssub.s32 256, 256
      %36 = vsyncadd [#allocation9], %s35
      %s37 = smul.addr %s33, 128
      %s38 = scalar_lea.hbm %s1, %s37
      %s39 = sshll.u32 [#allocation8], 4
      %s40 = int_to_ptr.vmem [resolvable:$true] %s39
      %45 = dma.hbm_to_vmem [thread:$0]  %s38, 256, %s40, [#allocation9], 128, 128, 8
    $region9: #{tpu_custom_call.1} parent=1 // pred_fallthru
      _
    // Predicated region
    $region10: #{tpu_custom_call.1} parent=1 // pred_check
      _
    $region11: #{tpu_custom_call.1} parent=1 // pred_check_branch
      %47 = sbr.rel (0) target = $region13
    $region12: #{tpu_custom_call.1} parent=1 // pred_region
      %48 = dma.done [#allocation6], 256
    $region13: #{tpu_custom_call.1} parent=1 // pred_fallthru
      _
    // Predicated region
    $region14: #{tpu_custom_call.1} parent=1 // pred_check
      _
    $region15: #{tpu_custom_call.1} parent=1 // pred_check_branch
      %50 = sbr.rel (0) target = $region17
    $region16: #{tpu_custom_call.1} parent=1 // pred_region
      %51 = dma.done [#allocation9], 256
    $region17: #{tpu_custom_call.1} parent=1 // pred_fallthru
      _
    %s52 = sadd.s32 0, 0
    %s53 = smul.u32 2, %s52
    %s54 = sadd.s32 0, 0
    %s55 = smul.u32 2, %s54
    %p56 = scmp.eq.s32.totalorder 0, 0
    // Predicated region
    $region18: #{tpu_custom_call.1} parent=1 // pred_check
      %p57 = pneg %p56
    $region19: #{tpu_custom_call.1} parent=1 // pred_check_branch
      %59 = sbr.rel (%p57) target = $region21
    $region20: #{tpu_custom_call.1} parent=1 // pred_region
      %60 = vst [vmem:[#allocation2] sm:$0xff] 0.0
      %61 = vst [vmem:[#allocation3] sm:$0xff] 0.0
      %62 = vst [vmem:[#allocation4] sm:$0xff] 0.0
    $region21: #{tpu_custom_call.1} parent=1 // pred_fallthru
      _
    %v63 = vld [vmem:[#allocation5] sm:$0xff]
    %v64 = vld [vmem:[#allocation5 + $0x8] sm:$0xff]
    %v65 = vld [vmem:[#allocation8] sm:$0xff]
    %v66 = vld [vmem:[#allocation8 + $0x8] sm:$0xff]
    %v67 = vmul.f32 %v63, %v65
    %v68 = vmul.f32 %v64, %v66
    %v69 = vld [vmem:[#allocation2] sm:$0xff]
    %v70 = vadd.f32 %v67, %v68
    %v71 = vadd.f32 %v69, %v70
    %72 = vst [vmem:[#allocation2] sm:$0xff] %v71
    %v73 = vld [vmem:[#allocation3] sm:$0xff]
    %v74 = vsub.f32 %v63, %v67
    %v75 = vsub.f32 %v64, %v68
    %v76 = vadd.f32 %v74, %v75
    %v77 = vadd.f32 %v73, %v76
    %78 = vst [vmem:[#allocation3] sm:$0xff] %v77
    %v79 = vld [vmem:[#allocation4] sm:$0xff]
    %v80 = vsub.f32 %v65, %v67
    %v81 = vsub.f32 %v66, %v68
    %v82 = vadd.f32 %v80, %v81
    %v83 = vadd.f32 %v79, %v82
    %84 = vst [vmem:[#allocation4] sm:$0xff] %v83
    // Predicated region
    $region22: #{tpu_custom_call.1} parent=1 // pred_check
      %p85 = pneg %p56
    $region23: #{tpu_custom_call.1} parent=1 // pred_check_branch
      %87 = sbr.rel (%p85) target = $region25
    $region24: #{tpu_custom_call.1} parent=1 // pred_region
      %v88 = vld [vmem:[#allocation2] sm:$0xff]
      %89 = vst [vmem:[#allocation10] sm:$0xff] %v88
      %v90 = vld [vmem:[#allocation3] sm:$0xff]
      %91 = vst [vmem:[#allocation11] sm:$0xff] %v90
      %v92 = vld [vmem:[#allocation4] sm:$0xff]
      %93 = vst [vmem:[#allocation13] sm:$0xff] %v92
    $region25: #{tpu_custom_call.1} parent=1 // pred_fallthru
      _
    // Predicated region
    $region26: #{tpu_custom_call.1} parent=1 // pred_check
      _
    $region27: #{tpu_custom_call.1} parent=1 // pred_check_branch
      %95 = sbr.rel (0) target = $region29
    $region28: #{tpu_custom_call.1} parent=1 // pred_region
      %s97 = ssub.s32 128, 128
      %98 = vsyncadd [#allocation7], %s97
      %s100 = sshll.u32 [#allocation10], 4
      %s101 = int_to_ptr.vmem [resolvable:$true] %s100
      %103 = dma.vmem_to_hbm [thread:$0]  %s101, 128, %s2, [#allocation7]
    $region29: #{tpu_custom_call.1} parent=1 // pred_fallthru
      _
    // Predicated region
    $region30: #{tpu_custom_call.1} parent=1 // pred_check
      _
    $region31: #{tpu_custom_call.1} parent=1 // pred_check_branch
      %105 = sbr.rel (0) target = $region33
    $region32: #{tpu_custom_call.1} parent=1 // pred_region
      %s107 = ssub.s32 128, 128
      %108 = vsyncadd [#allocation12], %s107
      %s110 = sshll.u32 [#allocation11], 4
      %s111 = int_to_ptr.vmem [resolvable:$true] %s110
      %113 = dma.vmem_to_hbm [thread:$0]  %s111, 128, %s3, [#allocation12]
    $region33: #{tpu_custom_call.1} parent=1 // pred_fallthru
      _
    // Predicated region
    $region34: #{tpu_custom_call.1} parent=1 // pred_check
      _
    $region35: #{tpu_custom_call.1} parent=1 // pred_check_branch
      %115 = sbr.rel (0) target = $region37
    $region36: #{tpu_custom_call.1} parent=1 // pred_region
      %s117 = ssub.s32 128, 128
      %118 = vsyncadd [#allocation12], %s117
      %s120 = sshll.u32 [#allocation13], 4
      %s121 = int_to_ptr.vmem [resolvable:$true] %s120
      %123 = dma.vmem_to_hbm [thread:$0]  %s121, 128, %s4, [#allocation12]
    $region37: #{tpu_custom_call.1} parent=1 // pred_fallthru
      _
    // Predicated region
    $region38: #{tpu_custom_call.1} parent=1 // pred_check
      _
    $region39: #{tpu_custom_call.1} parent=1 // pred_check_branch
      %125 = sbr.rel (0) target = $region41
    $region40: #{tpu_custom_call.1} parent=1 // pred_region
      %126 = dma.done [#allocation7], 128
    $region41: #{tpu_custom_call.1} parent=1 // pred_fallthru
      _
    // Predicated region
    $region42: #{tpu_custom_call.1} parent=1 // pred_check
      _
    $region43: #{tpu_custom_call.1} parent=1 // pred_check_branch
      %128 = sbr.rel (0) target = $region45
    $region44: #{tpu_custom_call.1} parent=1 // pred_region
      %129 = dma.done [#allocation12], 128
    $region45: #{tpu_custom_call.1} parent=1 // pred_fallthru
      _
    // Predicated region
    $region46: #{tpu_custom_call.1} parent=1 // pred_check
      _
    $region47: #{tpu_custom_call.1} parent=1 // pred_check_branch
      %131 = sbr.rel (0) target = $region49
    $region48: #{tpu_custom_call.1} parent=1 // pred_region
      %132 = dma.done [#allocation12], 128
    $region49: #{tpu_custom_call.1} parent=1 // pred_fallthru
      _
    %133 = vsyncpa [#allocation6], 1
    %134 = vsyncpa [#allocation9], 1
    %135 = vsyncpa [#allocation7], 1
    %136 = vsyncpa [#allocation12], 1

</llo_original>
